<compile_context>
chip_gen: v6e
topology: v6e:2x2x1
jax: 0.10.0
libtpu: 0.0.40
codegen_flags: <defaults>
</compile_context>

<pallas_src>
import functools

import jax
import jax.numpy as jnp
from jax.experimental import pallas as pl
from jax.experimental.pallas import tpu as pltpu

LANE = 128


def _round_up(x, m):
    return pl.cdiv(x, m) * m


def _vmem_limit_bytes():
    """Per-chip scoped-VMEM limit with headroom (v6e/v5e ~96 MiB, v7x ~48 MiB)."""
    try:
        cap = int(getattr(pltpu.get_tpu_info(), "vmem_capacity_bytes",
                          64 * 1024 * 1024))
    except Exception:
        cap = 64 * 1024 * 1024
    return int(min(cap * 3 // 4, 96 * 1024 * 1024))


# --------------------------------------------------------------------------
# Fused single-call path: whole problem resident in VMEM, x read exactly once.
# --------------------------------------------------------------------------
def _fused_kernel(x1_ref, x2_ref, w0_ref, w1_ref, g_ref, bt_ref, o_ref,
                  *, n_batch, hw, eps):
    c_out = w0_ref.shape[0]
    inv_m = 1.0 / float(n_batch * hw)
    s = jnp.zeros((c_out, 1), jnp.float32)
    q = jnp.zeros((c_out, 1), jnp.float32)
    ys = []
    for n in range(n_batch):                      # static, small (<= 32)
        y = (jnp.dot(w0_ref[...], x1_ref[n], preferred_element_type=jnp.float32)
             + jnp.dot(w1_ref[...], x2_ref[n], preferred_element_type=jnp.float32))
        ys.append(y)
        s = s + jnp.sum(y, axis=-1, keepdims=True)
        q = q + jnp.sum(y * y, axis=-1, keepdims=True)
    mean = s * inv_m
    var = jnp.maximum(q * inv_m - mean * mean, 0.0)      # guard f32 cancellation
    scale = g_ref[...] * jax.lax.rsqrt(var + eps)        # EUP rsqrt
    shift = bt_ref[...] - mean * scale
    for n in range(n_batch):
        o_ref[n] = jnp.maximum(ys[n] * scale + shift, 0.0).astype(o_ref.dtype)


def _fused_forward(x1r, x2r, w0, w1, gamma, beta, eps, out_dtype, vmem_limit):
    N, C_in, HW = x1r.shape
    C_out = w0.shape[0]
    w0c = w0.astype(x1r.dtype)
    w1c = w1.astype(x1r.dtype)
    g2 = gamma.reshape(C_out, 1).astype(jnp.float32)
    b2 = beta.reshape(C_out, 1).astype(jnp.float32)

    flops = 2 * 2 * C_in * C_out * N * HW + 6 * N * C_out * HW
    bytes_acc = (2 * N * C_in * HW * x1r.dtype.itemsize
                 + N * C_out * HW * jnp.dtype(out_dtype).itemsize)

    return pl.pallas_call(
        functools.partial(_fused_kernel, n_batch=N, hw=HW, eps=eps),
        out_shape=jax.ShapeDtypeStruct((N, C_out, HW), out_dtype),
        grid_spec=pltpu.PrefetchScalarGridSpec(
            num_scalar_prefetch=0,
            grid=(1,),
            in_specs=[
                pl.BlockSpec((N, C_in, HW), lambda i: (0, 0, 0)),
                pl.BlockSpec((N, C_in, HW), lambda i: (0, 0, 0)),
                pl.BlockSpec((C_out, C_in), lambda i: (0, 0)),
                pl.BlockSpec((C_out, C_in), lambda i: (0, 0)),
                pl.BlockSpec((C_out, 1), lambda i: (0, 0)),
                pl.BlockSpec((C_out, 1), lambda i: (0, 0)),
            ],
            out_specs=pl.BlockSpec((N, C_out, HW), lambda i: (0, 0, 0))),
        compiler_params=pltpu.CompilerParams(
            dimension_semantics=("arbitrary",),
            vmem_limit_bytes=vmem_limit),
        cost_estimate=pl.CostEstimate(flops=flops, transcendentals=C_out,
                                      bytes_accessed=bytes_acc),
    )(x1r, x2r, w0c, w1c, g2, b2)


# --------------------------------------------------------------------------
# Tiled two-pass path: pass 1 = conv + resident partial stats, pass 2 = fused
# (scale-folded) conv + shift + ReLU with lane-dense stores.
# --------------------------------------------------------------------------
def _stats_kernel(x1_ref, x2_ref, w0_ref, w1_ref, sum_ref, ssq_ref,
                  *, nb, tm, hw, ragged):
    m = pl.program_id(1)

    @pl.when(m == 0)
    def _():
        sum_ref[...] = jnp.zeros_like(sum_ref)
        ssq_ref[...] = jnp.zeros_like(ssq_ref)

    if ragged:
        lane = jax.lax.broadcasted_iota(jnp.int32, (1, tm), 1)
        valid = (m * tm + lane) < hw          # mask garbage lanes of last tile

    s = jnp.zeros(sum_ref.shape[1:], jnp.float32)
    q = jnp.zeros(ssq_ref.shape[1:], jnp.float32)
    for n in range(nb):                        # static batch block, small
        y = (jnp.dot(w0_ref[...], x1_ref[n], preferred_element_type=jnp.float32)
             + jnp.dot(w1_ref[...], x2_ref[n], preferred_element_type=jnp.float32))
        if ragged:
            y = jnp.where(valid, y, 0.0)
        s = s + jnp.sum(y, axis=-1, keepdims=True)
        q = q + jnp.sum(y * y, axis=-1, keepdims=True)
    # Accumulate into the m-resident output block (written back once per b).
    sum_ref[0] = sum_ref[0] + s
    ssq_ref[0] = ssq_ref[0] + q


def _bn_relu_kernel(x1_ref, x2_ref, ws0_ref, ws1_ref, shift_ref, o_ref, *, nb):
    for n in range(nb):
        y = (jnp.dot(ws0_ref[...], x1_ref[n], preferred_element_type=jnp.float32)
             + jnp.dot(ws1_ref[...], x2_ref[n], preferred_element_type=jnp.float32))
        # BN scale already folded into the taps; ragged tail lanes are masked
        # by Pallas on the store.
        o_ref[n] = jnp.maximum(y + shift_ref[...], 0.0).astype(o_ref.dtype)


def _tiled_forward(x1r, x2r, w0, w1, gamma, beta, eps, out_dtype, vmem_limit,
                   max_tile_lanes):
    N, C_in, HW = x1r.shape
    C_out = w0.shape[0]
    itemsize = x1r.dtype.itemsize
    out_itemsize = jnp.dtype(out_dtype).itemsize
    HW128 = _round_up(HW, LANE)

    # ---- Tile sizing: big lane-dense tiles, minimal padding, VMEM-budgeted --
    budget = vmem_limit // 2                      # double-buffered working set
    per_lane_bytes = 2 * C_in * itemsize + C_out * max(out_itemsize, 4)
    tm_budget = max(LANE, (budget // (2 * per_lane_bytes)) // LANE * LANE)
    tm_cap = min(16384, tm_budget, HW128)
    if max_tile_lanes is not None:
        tm_cap = min(tm_cap, max(LANE, _round_up(int(max_tile_lanes), LANE)))
    nM = pl.cdiv(HW128, tm_cap)
    TM = _round_up(pl.cdiv(HW128, nM), LANE)      # minimizes pad waste
    ragged = (HW % TM) != 0

    # ---- Batch blocking: amortize fixed per-step cost; Nb | N so stats stay
    # exact (no batch masking); keep the outer parallel axis >= 2 when N >= 2.
    Nb = 1
    step_bytes_one = TM * per_lane_bytes
    for nb in range(1, min(N, 8) + 1):
        if N % nb != 0:
            continue
        if 2 * nb * step_bytes_one > budget:
            break
        if N > 1 and N // nb < 2:
            break
        Nb = nb
        if nb * step_bytes_one >= (4 << 20):      # ~4 MiB/step is plenty
            break
    nN = N // Nb
    grid = (nN, nM)

    w0c = w0.astype(x1r.dtype)
    w1c = w1.astype(x1r.dtype)

    x_spec = pl.BlockSpec((Nb, C_in, TM), lambda b, m: (b, 0, m))
    w_spec = pl.BlockSpec((C_out, C_in), lambda b, m: (0, 0))
    stat_spec = pl.BlockSpec((1, C_out, 1), lambda b, m: (b, 0, 0))

    flops_conv = 2 * 2 * C_in * C_out * N * TM * nM
    bytes_x = 2 * N * C_in * HW * itemsize

    # ---- Pass 1: conv + per-channel partial stats (resident across m) -------
    psum, pssq = pl.pallas_call(
        functools.partial(_stats_kernel, nb=Nb, tm=TM, hw=HW, ragged=ragged),
        out_shape=(jax.ShapeDtypeStruct((nN, C_out, 1), jnp.float32),
                   jax.ShapeDtypeStruct((nN, C_out, 1), jnp.float32)),
        grid_spec=pltpu.PrefetchScalarGridSpec(
            num_scalar_prefetch=0, grid=grid,
            in_specs=[x_spec, x_spec, w_spec, w_spec],
            out_specs=(stat_spec, stat_spec)),
        compiler_params=pltpu.CompilerParams(
            dimension_semantics=("parallel", "arbitrary"),
            vmem_limit_bytes=vmem_limit),
        cost_estimate=pl.CostEstimate(
            flops=flops_conv, transcendentals=0,
            bytes_accessed=bytes_x + 2 * nN * C_out * 4),
    )(x1r, x2r, w0c, w1c)

    # ---- BN finalization (tiny per-channel math stays in XLA glue) ----------
    M_true = N * HW
    s = jnp.sum(psum, axis=(0, 2))
    ss = jnp.sum(pssq, axis=(0, 2))
    mean = s / M_true
    var = jnp.maximum(ss / M_true - mean * mean, 0.0)
    scale = gamma * jax.lax.rsqrt(var + eps)
    shift = beta - mean * scale                   # conv bias cancels exactly
    ws0 = (w0 * scale[:, None]).astype(x1r.dtype)  # fold BN scale into taps
    ws1 = (w1 * scale[:, None]).astype(x1r.dtype)
    shift2 = shift.reshape(C_out, 1).astype(jnp.float32)

    # ---- Pass 2: conv with scaled taps + shift + ReLU, lane-dense store -----
    out = pl.pallas_call(
        functools.partial(_bn_relu_kernel, nb=Nb),
        out_shape=jax.ShapeDtypeStruct((N, C_out, HW), out_dtype),
        grid_spec=pltpu.PrefetchScalarGridSpec(
            num_scalar_prefetch=0, grid=grid,
            in_specs=[x_spec, x_spec, w_spec, w_spec,
                      pl.BlockSpec((C_out, 1), lambda b, m: (0, 0))],
            out_specs=pl.BlockSpec((Nb, C_out, TM), lambda b, m: (b, 0, m))),
        compiler_params=pltpu.CompilerParams(
            dimension_semantics=("parallel", "parallel"),
            vmem_limit_bytes=vmem_limit),
        cost_estimate=pl.CostEstimate(
            flops=flops_conv + 2 * N * C_out * TM * nM, transcendentals=0,
            bytes_accessed=bytes_x + N * C_out * HW * out_itemsize),
    )(x1r, x2r, ws0, ws1, shift2)
    return out


# --------------------------------------------------------------------------
# Public wrapper
# --------------------------------------------------------------------------
def temporal_conv3d(x1, x2, w, b, gamma, beta, eps=1e-5,
                    force_tiled=False, max_tile_lanes=None):
    """x1, x2: (N, C_in, H, W); w: (C_out, C_in, 2, 1, 1); b/gamma/beta: (C_out,).

    Returns (N, C_out, H, W) in the activation dtype, matching the PyTorch
    module's training-mode forward. `b` is accepted for API fidelity but
    unused: the conv bias cancels exactly through BatchNorm.
    """
    del b
    N, C_in, H, W = x1.shape
    C_out = w.shape[0]
    HW = H * W
    out_dtype = x1.dtype        # output stream follows activation dtype (bf16 ok)

    # NCHW -> (N, C, H*W): pure reshape, zero data movement. Channels land on
    # sublanes, spatial on lanes (lane-dense stores).
    x1r = x1.reshape(N, C_in, HW)
    x2r = x2.reshape(N, C_in, HW)
    w0 = w[:, :, 0, 0, 0]
    w1 = w[:, :, 1, 0, 0]

    vmem_limit = _vmem_limit_bytes()
    itemsize = x1r.dtype.itemsize
    out_itemsize = jnp.dtype(out_dtype).itemsize
    HW128 = _round_up(HW, LANE)
    fused_bytes = (2 * N * C_in * HW128 * itemsize     # x1 + x2
                   + N * C_out * HW128 * 4             # y kept live in f32
                   + N * C_out * HW128 * out_itemsize)  # output

    if (not force_tiled) and N <= 32 and fused_bytes * 3 // 2 <= vmem_limit:
        out = _fused_forward(x1r, x2r, w0, w1, gamma, beta, eps,
                             out_dtype, vmem_limit)
    else:
        out = _tiled_forward(x1r, x2r, w0, w1, gamma, beta, eps,
                             out_dtype, vmem_limit, max_tile_lanes)
    return out.reshape(N, C_out, H, W)
    # TODO(synk): BatchNorm3d running_mean/running_var buffer updates (training
    # side effect) are not materialized; forward output does not depend on them
    # (and running_mean would need the dropped conv bias added back).


def _reference(x1, x2, w, b, gamma, beta, eps=1e-5):
    """Pure-JAX reference matching the PyTorch module's training-mode forward
    (including the conv bias, which must cancel through BatchNorm)."""
    y = (jnp.einsum('nchw,oc->nohw', x1, w[:, :, 0, 0, 0])
         + jnp.einsum('nchw,oc->nohw', x2, w[:, :, 1, 0, 0])
         + b[None, :, None, None])
    mean = jnp.mean(y, axis=(0, 2, 3), keepdims=True)
    var = jnp.mean((y - mean) ** 2, axis=(0, 2, 3), keepdims=True)  # biased
    yhat = (y - mean) / jnp.sqrt(var + eps)
    return jnp.maximum(gamma[None, :, None, None] * yhat
                       + beta[None, :, None, None], 0.0)


if __name__ == "__main__":
    key = jax.random.PRNGKey(0)
    k1, k2, kw, kb, kg, kbt = jax.random.split(key, 6)

    def make_inputs(N, C_in, C_out, H, W):
        x1 = jax.random.normal(k1, (N, C_in, H, W), dtype=jnp.float32)
        x2 = jax.random.normal(k2, (N, C_in, H, W), dtype=jnp.float32)
        w = 0.1 * jax.random.normal(kw, (C_out, C_in, 2, 1, 1), dtype=jnp.float32)
        b = 0.1 * jax.random.normal(kb, (C_out,), dtype=jnp.float32)
        gamma = 1.0 + 0.1 * jax.random.normal(kg, (C_out,), dtype=jnp.float32)
        beta = 0.1 * jax.random.normal(kbt, (C_out,), dtype=jnp.float32)
        return x1, x2, w, b, gamma, beta

    fwd = jax.jit(temporal_conv3d,
                  static_argnames=("eps", "force_tiled", "max_tile_lanes"))

    cases = [
        # (H, W, force_tiled, max_tile_lanes)
        (16, 16, False, None),   # fused single-call path
        (16, 16, True, None),    # tiled two-pass, single spatial tile
        (16, 16, True, 128),     # tiled, multi-tile m-resident stats
        (15, 15, False, None),   # fused, ragged H*W
        (15, 15, True, 128),     # tiled, ragged multi-tile (lane masking)
    ]
    for (H, W, force_tiled, mtl) in cases:
        args = make_inputs(2, 4, 8, H, W)
        ref = jax.block_until_ready(_reference(*args))
        out = jax.block_until_ready(
            fwd(*args, force_tiled=force_tiled, max_tile_lanes=mtl))
        assert out.shape == ref.shape, (out.shape, ref.shape)
        err = float(jnp.max(jnp.abs(out - ref)))
        assert err < 1e-4, f"mismatch H={H} tiled={force_tiled} tm={mtl}: {err}"

    print("KERNEL_OK")
</pallas_src>

<mosaic_0001>
module attributes {stable_mosaic.version = 11 : i64} {
  func.func @_fused_kernel(%arg0: i32, %arg1: memref<2x4x256xf32, #tpu.memory_space<vmem>>, %arg2: memref<2x4x256xf32, #tpu.memory_space<vmem>>, %arg3: memref<8x4xf32, #tpu.memory_space<vmem>>, %arg4: memref<8x4xf32, #tpu.memory_space<vmem>>, %arg5: memref<8x1xf32, #tpu.memory_space<vmem>>, %arg6: memref<8x1xf32, #tpu.memory_space<vmem>>, %arg7: memref<2x8x256xf32, #tpu.memory_space<vmem>>) attributes {dimension_semantics = [#tpu.dimension_semantics<arbitrary>], iteration_bounds = array<i64: 1>, scalar_prefetch = 0 : i64, scratch_operands = 0 : i64, tpu.core_type = #tpu.core_type<tc>, window_params = [{pipeline_mode = #tpu.pipeline_mode<synchronous>, transform_indices = @transform_0, window_bounds = array<i64: 2, 4, 256>}, {pipeline_mode = #tpu.pipeline_mode<synchronous>, transform_indices = @transform_1, window_bounds = array<i64: 2, 4, 256>}, {pipeline_mode = #tpu.pipeline_mode<synchronous>, transform_indices = @transform_2, window_bounds = array<i64: 8, 4>}, {pipeline_mode = #tpu.pipeline_mode<synchronous>, transform_indices = @transform_3, window_bounds = array<i64: 8, 4>}, {pipeline_mode = #tpu.pipeline_mode<synchronous>, transform_indices = @transform_4, window_bounds = array<i64: 8, 1>}, {pipeline_mode = #tpu.pipeline_mode<synchronous>, transform_indices = @transform_5, window_bounds = array<i64: 8, 1>}, {pipeline_mode = #tpu.pipeline_mode<synchronous>, transform_indices = @transform_6, window_bounds = array<i64: 2, 8, 256>}]} {
    %cst = arith.constant 0.000000e+00 : f32
    %0 = vector.broadcast %cst : f32 to vector<8x1xf32>
    %cst_0 = arith.constant 0.000000e+00 : f32
    %1 = vector.broadcast %cst_0 : f32 to vector<8x1xf32>
    %c0 = arith.constant 0 : index
    %c0_1 = arith.constant 0 : index
    %2 = vector.load %arg3[%c0, %c0_1] : memref<8x4xf32, #tpu.memory_space<vmem>>, vector<8x4xf32>
    %c0_2 = arith.constant 0 : index
    %c0_3 = arith.constant 0 : index
    %c0_4 = arith.constant 0 : index
    %3 = vector.load %arg1[%c0_2, %c0_3, %c0_4] : memref<2x4x256xf32, #tpu.memory_space<vmem>>, vector<1x4x256xf32>
    %4 = vector.shape_cast %3 : vector<1x4x256xf32> to vector<4x256xf32>
    %cst_5 = arith.constant dense<0.000000e+00> : vector<8x256xf32>
    %5 = tpu.matmul %2, %4, %cst_5 {dimension_numbers = #tpu.dot_dimension_numbers<[1], [0], [0], [1], [0, 0, 1, 1], [], []>} : vector<8x4xf32>, vector<4x256xf32>, vector<8x256xf32> -> vector<8x256xf32>
    %c0_6 = arith.constant 0 : index
    %c0_7 = arith.constant 0 : index
    %6 = vector.load %arg4[%c0_6, %c0_7] : memref<8x4xf32, #tpu.memory_space<vmem>>, vector<8x4xf32>
    %c0_8 = arith.constant 0 : index
    %c0_9 = arith.constant 0 : index
    %c0_10 = arith.constant 0 : index
    %7 = vector.load %arg2[%c0_8, %c0_9, %c0_10] : memref<2x4x256xf32, #tpu.memory_space<vmem>>, vector<1x4x256xf32>
    %8 = vector.shape_cast %7 : vector<1x4x256xf32> to vector<4x256xf32>
    %cst_11 = arith.constant dense<0.000000e+00> : vector<8x256xf32>
    %9 = tpu.matmul %6, %8, %cst_11 {dimension_numbers = #tpu.dot_dimension_numbers<[1], [0], [0], [1], [0, 0, 1, 1], [], []>} : vector<8x4xf32>, vector<4x256xf32>, vector<8x256xf32> -> vector<8x256xf32>
    %10 = arith.addf %5, %9 : vector<8x256xf32>
    %cst_12 = arith.constant dense<0.000000e+00> : vector<8xf32>
    %11 = vector.multi_reduction <add>, %10, %cst_12 [1] : vector<8x256xf32> to vector<8xf32>
    %12 = vector.shape_cast %11 : vector<8xf32> to vector<8x1xf32>
    %13 = arith.addf %0, %12 : vector<8x1xf32>
    %14 = arith.mulf %10, %10 : vector<8x256xf32>
    %cst_13 = arith.constant dense<0.000000e+00> : vector<8xf32>
    %15 = vector.multi_reduction <add>, %14, %cst_13 [1] : vector<8x256xf32> to vector<8xf32>
    %16 = vector.shape_cast %15 : vector<8xf32> to vector<8x1xf32>
    %17 = arith.addf %1, %16 : vector<8x1xf32>
    %c0_14 = arith.constant 0 : index
    %c0_15 = arith.constant 0 : index
    %18 = vector.load %arg3[%c0_14, %c0_15] : memref<8x4xf32, #tpu.memory_space<vmem>>, vector<8x4xf32>
    %c1 = arith.constant 1 : index
    %c0_16 = arith.constant 0 : index
    %c0_17 = arith.constant 0 : index
    %19 = vector.load %arg1[%c1, %c0_16, %c0_17] : memref<2x4x256xf32, #tpu.memory_space<vmem>>, vector<1x4x256xf32>
    %20 = vector.shape_cast %19 : vector<1x4x256xf32> to vector<4x256xf32>
    %cst_18 = arith.constant dense<0.000000e+00> : vector<8x256xf32>
    %21 = tpu.matmul %18, %20, %cst_18 {dimension_numbers = #tpu.dot_dimension_numbers<[1], [0], [0], [1], [0, 0, 1, 1], [], []>} : vector<8x4xf32>, vector<4x256xf32>, vector<8x256xf32> -> vector<8x256xf32>
    %c0_19 = arith.constant 0 : index
    %c0_20 = arith.constant 0 : index
    %22 = vector.load %arg4[%c0_19, %c0_20] : memref<8x4xf32, #tpu.memory_space<vmem>>, vector<8x4xf32>
    %c1_21 = arith.constant 1 : index
    %c0_22 = arith.constant 0 : index
    %c0_23 = arith.constant 0 : index
    %23 = vector.load %arg2[%c1_21, %c0_22, %c0_23] : memref<2x4x256xf32, #tpu.memory_space<vmem>>, vector<1x4x256xf32>
    %24 = vector.shape_cast %23 : vector<1x4x256xf32> to vector<4x256xf32>
    %cst_24 = arith.constant dense<0.000000e+00> : vector<8x256xf32>
    %25 = tpu.matmul %22, %24, %cst_24 {dimension_numbers = #tpu.dot_dimension_numbers<[1], [0], [0], [1], [0, 0, 1, 1], [], []>} : vector<8x4xf32>, vector<4x256xf32>, vector<8x256xf32> -> vector<8x256xf32>
    %26 = arith.addf %21, %25 : vector<8x256xf32>
    %cst_25 = arith.constant dense<0.000000e+00> : vector<8xf32>
    %27 = vector.multi_reduction <add>, %26, %cst_25 [1] : vector<8x256xf32> to vector<8xf32>
    %28 = vector.shape_cast %27 : vector<8xf32> to vector<8x1xf32>
    %29 = arith.addf %13, %28 : vector<8x1xf32>
    %30 = arith.mulf %26, %26 : vector<8x256xf32>
    %cst_26 = arith.constant dense<0.000000e+00> : vector<8xf32>
    %31 = vector.multi_reduction <add>, %30, %cst_26 [1] : vector<8x256xf32> to vector<8xf32>
    %32 = vector.shape_cast %31 : vector<8xf32> to vector<8x1xf32>
    %33 = arith.addf %17, %32 : vector<8x1xf32>
    %cst_27 = arith.constant 0.001953125 : f32
    %34 = vector.broadcast %cst_27 : f32 to vector<8x1xf32>
    %35 = arith.mulf %29, %34 : vector<8x1xf32>
    %cst_28 = arith.constant 0.001953125 : f32
    %36 = vector.broadcast %cst_28 : f32 to vector<8x1xf32>
    %37 = arith.mulf %33, %36 : vector<8x1xf32>
    %38 = arith.mulf %35, %35 : vector<8x1xf32>
    %39 = arith.subf %37, %38 : vector<8x1xf32>
    %cst_29 = arith.constant 0.000000e+00 : f32
    %40 = vector.broadcast %cst_29 : f32 to vector<8x1xf32>
    %41 = arith.maximumf %39, %40 : vector<8x1xf32>
    %c0_30 = arith.constant 0 : index
    %c0_31 = arith.constant 0 : index
    %42 = vector.load %arg5[%c0_30, %c0_31] : memref<8x1xf32, #tpu.memory_space<vmem>>, vector<8x1xf32>
    %cst_32 = arith.constant 9.99999974E-6 : f32
    %43 = vector.broadcast %cst_32 : f32 to vector<8x1xf32>
    %44 = arith.addf %41, %43 : vector<8x1xf32>
    %45 = math.rsqrt %44 : vector<8x1xf32>
    %46 = arith.mulf %42, %45 : vector<8x1xf32>
    %c0_33 = arith.constant 0 : index
    %c0_34 = arith.constant 0 : index
    %47 = vector.load %arg6[%c0_33, %c0_34] : memref<8x1xf32, #tpu.memory_space<vmem>>, vector<8x1xf32>
    %48 = arith.mulf %35, %46 : vector<8x1xf32>
    %49 = arith.subf %47, %48 : vector<8x1xf32>
    %50 = vector.broadcast %46 : vector<8x1xf32> to vector<8x256xf32>
    %51 = arith.mulf %10, %50 : vector<8x256xf32>
    %52 = vector.broadcast %49 : vector<8x1xf32> to vector<8x256xf32>
    %53 = arith.addf %51, %52 : vector<8x256xf32>
    %cst_35 = arith.constant 0.000000e+00 : f32
    %54 = vector.broadcast %cst_35 : f32 to vector<8x256xf32>
    %55 = arith.maximumf %53, %54 : vector<8x256xf32>
    %c0_36 = arith.constant 0 : index
    %c0_37 = arith.constant 0 : index
    %c0_38 = arith.constant 0 : index
    %56 = vector.load %arg7[%c0_36, %c0_37, %c0_38] : memref<2x8x256xf32, #tpu.memory_space<vmem>>, vector<1x8x256xf32>
    %57 = vector.shape_cast %56 : vector<1x8x256xf32> to vector<8x256xf32>
    %58 = vector.shape_cast %55 : vector<8x256xf32> to vector<1x8x256xf32>
    tpu.vector_store %arg7[%c0_36, %c0_37, %c0_38], %58 {strides = array<i32>} : memref<2x8x256xf32, #tpu.memory_space<vmem>>, vector<1x8x256xf32>,
    %59 = vector.broadcast %46 : vector<8x1xf32> to vector<8x256xf32>
    %60 = arith.mulf %26, %59 : vector<8x256xf32>
    %61 = vector.broadcast %49 : vector<8x1xf32> to vector<8x256xf32>
    %62 = arith.addf %60, %61 : vector<8x256xf32>
    %cst_39 = arith.constant 0.000000e+00 : f32
    %63 = vector.broadcast %cst_39 : f32 to vector<8x256xf32>
    %64 = arith.maximumf %62, %63 : vector<8x256xf32>
    %c1_40 = arith.constant 1 : index
    %c0_41 = arith.constant 0 : index
    %c0_42 = arith.constant 0 : index
    %65 = vector.load %arg7[%c1_40, %c0_41, %c0_42] : memref<2x8x256xf32, #tpu.memory_space<vmem>>, vector<1x8x256xf32>
    %66 = vector.shape_cast %65 : vector<1x8x256xf32> to vector<8x256xf32>
    %67 = vector.shape_cast %64 : vector<8x256xf32> to vector<1x8x256xf32>
    tpu.vector_store %arg7[%c1_40, %c0_41, %c0_42], %67 {strides = array<i32>} : memref<2x8x256xf32, #tpu.memory_space<vmem>>, vector<1x8x256xf32>,
    return
  }
  func.func @transform_0(%arg0: i32) -> (i32, i32, i32) {
    %c0_i32 = arith.constant 0 : i32
    %c0_i32_0 = arith.constant 0 : i32
    %c0_i32_1 = arith.constant 0 : i32
    %c0_i32_2 = arith.constant 0 : i32
    return %c0_i32, %c0_i32_0, %c0_i32_1 : i32, i32, i32
  }
  func.func @transform_1(%arg0: i32) -> (i32, i32, i32) {
    %c0_i32 = arith.constant 0 : i32
    %c0_i32_0 = arith.constant 0 : i32
    %c0_i32_1 = arith.constant 0 : i32
    %c0_i32_2 = arith.constant 0 : i32
    return %c0_i32, %c0_i32_0, %c0_i32_1 : i32, i32, i32
  }
  func.func @transform_2(%arg0: i32) -> (i32, i32) {
    %c0_i32 = arith.constant 0 : i32
    %c0_i32_0 = arith.constant 0 : i32
    %c0_i32_1 = arith.constant 0 : i32
    return %c0_i32, %c0_i32_0 : i32, i32
  }
  func.func @transform_3(%arg0: i32) -> (i32, i32) {
    %c0_i32 = arith.constant 0 : i32
    %c0_i32_0 = arith.constant 0 : i32
    %c0_i32_1 = arith.constant 0 : i32
    return %c0_i32, %c0_i32_0 : i32, i32
  }
  func.func @transform_4(%arg0: i32) -> (i32, i32) {
    %c0_i32 = arith.constant 0 : i32
    %c0_i32_0 = arith.constant 0 : i32
    %c0_i32_1 = arith.constant 0 : i32
    return %c0_i32, %c0_i32_0 : i32, i32
  }
  func.func @transform_5(%arg0: i32) -> (i32, i32) {
    %c0_i32 = arith.constant 0 : i32
    %c0_i32_0 = arith.constant 0 : i32
    %c0_i32_1 = arith.constant 0 : i32
    return %c0_i32, %c0_i32_0 : i32, i32
  }
  func.func @transform_6(%arg0: i32) -> (i32, i32, i32) {
    %c0_i32 = arith.constant 0 : i32
    %c0_i32_0 = arith.constant 0 : i32
    %c0_i32_1 = arith.constant 0 : i32
    %c0_i32_2 = arith.constant 0 : i32
    return %c0_i32, %c0_i32_0, %c0_i32_1 : i32, i32, i32
  }
}

</mosaic_0001>

<llo_original>
// kernel: temporal_conv3d.1
$region0: #{temporal_conv3d.1}
  #allocation0 [shape = 'u32[]', space=smem, size = 0x4, offset = 0x4, fixed_abs, tag = 'smem constant byte address 0x4 - core index']
  #allocation1 [shape = 'u32[144,128]{1,0:T(1,128)}', space=vmem, size = 0x12000, scoped, tag = 'internal scratch']
  %s0 = inlined_call_operand.vmem [shape: f32[2,4,256], index: 0, kind: input, shape index: {}]
  %s1 = inlined_call_operand.vmem [shape: f32[2,4,256], index: 1, kind: input, shape index: {}]
  %s2 = inlined_call_operand.vmem [shape: f32[8,4], index: 2, kind: input, shape index: {}]
  %s3 = inlined_call_operand.vmem [shape: f32[8,4], index: 3, kind: input, shape index: {}]
  %s4 = inlined_call_operand.vmem [shape: f32[8,1], index: 4, kind: input, shape index: {}]
  %s5 = inlined_call_operand.vmem [shape: f32[8,1], index: 5, kind: input, shape index: {}]
  %s6 = inlined_call_operand.vmem [shape: f32[2,8,256], index: 6, kind: output, shape index: {}]
  %s7 = sld [smem:[#allocation0]]
  $region34: #{temporal_conv3d.1} parent=0
    _
  %s9 = ssub.s32 1, %s7
  %s10 = scalar_select 0, %s9, %s7
  // Predicated region
  $region2: #{temporal_conv3d.1} parent=0 // pred_check
    _
  $region3: #{temporal_conv3d.1} parent=0 // pred_check_branch
    %12 = sbr.rel (0) target = $region5
  $region4: #{temporal_conv3d.1} parent=0 // pred_region
    _
  $region5: #{temporal_conv3d.1} parent=0 // pred_fallthru
    _
  // Predicated region
  $region6: #{temporal_conv3d.1} parent=0 // pred_check
    _
  $region7: #{temporal_conv3d.1} parent=0 // pred_check_branch
    %14 = sbr.rel (0) target = $region9
  $region8: #{temporal_conv3d.1} parent=0 // pred_region
    _
  $region9: #{temporal_conv3d.1} parent=0 // pred_fallthru
    _
  // Predicated region
  $region10: #{temporal_conv3d.1} parent=0 // pred_check
    _
  $region11: #{temporal_conv3d.1} parent=0 // pred_check_branch
    %16 = sbr.rel (0) target = $region13
  $region12: #{temporal_conv3d.1} parent=0 // pred_region
    _
  $region13: #{temporal_conv3d.1} parent=0 // pred_fallthru
    _
  // Predicated region
  $region14: #{temporal_conv3d.1} parent=0 // pred_check
    _
  $region15: #{temporal_conv3d.1} parent=0 // pred_check_branch
    %18 = sbr.rel (0) target = $region17
  $region16: #{temporal_conv3d.1} parent=0 // pred_region
    _
  $region17: #{temporal_conv3d.1} parent=0 // pred_fallthru
    _
  // Predicated region
  $region18: #{temporal_conv3d.1} parent=0 // pred_check
    _
  $region19: #{temporal_conv3d.1} parent=0 // pred_check_branch
    %20 = sbr.rel (0) target = $region21
  $region20: #{temporal_conv3d.1} parent=0 // pred_region
    _
  $region21: #{temporal_conv3d.1} parent=0 // pred_fallthru
    _
  // Predicated region
  $region22: #{temporal_conv3d.1} parent=0 // pred_check
    _
  $region23: #{temporal_conv3d.1} parent=0 // pred_check_branch
    %22 = sbr.rel (0) target = $region25
  $region24: #{temporal_conv3d.1} parent=0 // pred_region
    _
  $region25: #{temporal_conv3d.1} parent=0 // pred_fallthru
    _
  %v23 = vld [vmem:[%s2] sm:$0xff]
  %v24 = vld [vmem:[%s0] sm:$0xff]
  %v25 = vld [vmem:[%s3] sm:$0xff]
  %v26 = vld [vmem:[%s1] sm:$0xff]
  %v28 = vcombine.high %v26, %v26
  %vm29 = vcmask 31744
  %v31 = vsel %vm29, %v25, 0
  %vm33 = vcmask 1043456
  %v34 = vsel %vm33, %v26, 0
  %v36 = vsel %vm33, %v28, 0
  %38 = vmatprep.subr.mxu0 0.0
  %39 = vmatpush1.msra.mxu0 0.0
  %40 = vmatprep.subr.mxu0 0.0
  %41 = vmatpush1.msra.mxu0 0.0
  %42 = vmatprep.subr.mxu0 0.0
  %43 = vmatpush1.msra.mxu0 0.0
  %44 = vmatprep.subr.mxu0 0.0
  %45 = vmatpush1.msra.mxu0 0.0
  %46 = vmatprep.subr.mxu0 0.0
  %47 = vmatpush1.msra.mxu0 0.0
  %48 = vmatprep.subr.mxu0 0.0
  %49 = vmatpush1.msra.mxu0 0.0
  %50 = vmatprep.subr.mxu0 0.0
  %51 = vmatpush1.msra.mxu0 0.0
  %52 = vmatprep.subr.mxu0 0.0
  %53 = vmatpush1.msra.mxu0 0.0
  %54 = vmatprep.subr.mxu0 0.0
  %55 = vmatpush1.msra.mxu0 0.0
  %56 = vmatprep.subr.mxu0 0.0
  %57 = vmatpush1.msra.mxu0 0.0
  %58 = vmatprep.subr.mxu0 0.0
  %59 = vmatpush1.msra.mxu0 0.0
  %60 = vmatprep.subr.mxu0 0.0
  %61 = vmatpush1.msra.mxu0 0.0
  %62 = vmatprep.subr.mxu0 0.0
  %63 = vmatpush1.msra.mxu0 0.0
  %64 = vmatprep.subr.mxu0 0.0
  %65 = vmatpush1.msra.mxu0 0.0
  %66 = vmatprep.subr.mxu0 0.0
  %67 = vmatpush1.msra.mxu0 0.0
  %68 = vmatprep.subr.mxu0 %v36
  %69 = vmatpush1.msra.mxu0 %v34
  %70 = vmatprep.subr.mxu0 0.0
  %71 = vmatpush2.msra.mxu0 0.0
  %72 = vmatprep.subr.mxu0 0.0
  %73 = vmatpush2.msra.mxu0 0.0
  %74 = vmatprep.subr.mxu0 0.0
  %75 = vmatpush2.msra.mxu0 0.0
  %76 = vmatprep.subr.mxu0 0.0
  %77 = vmatpush2.msra.mxu0 0.0
  %78 = vmatprep.subr.mxu0 0.0
  %79 = vmatpush2.msra.mxu0 0.0
  %80 = vmatprep.subr.mxu0 0.0
  %81 = vmatpush2.msra.mxu0 0.0
  %82 = vmatprep.subr.mxu0 0.0
  %83 = vmatpush2.msra.mxu0 0.0
  %84 = vmatprep.subr.mxu0 0.0
  %85 = vmatpush2.msra.mxu0 0.0
  %86 = vmatprep.subr.mxu0 0.0
  %87 = vmatpush2.msra.mxu0 0.0
  %88 = vmatprep.subr.mxu0 0.0
  %89 = vmatpush2.msra.mxu0 0.0
  %90 = vmatprep.subr.mxu0 0.0
  %91 = vmatpush2.msra.mxu0 0.0
  %92 = vmatprep.subr.mxu0 0.0
  %93 = vmatpush2.msra.mxu0 0.0
  %94 = vmatprep.subr.mxu0 0.0
  %95 = vmatpush2.msra.mxu0 0.0
  %96 = vmatprep.subr.mxu0 0.0
  %97 = vmatpush2.msra.mxu0 0.0
  %98 = vmatprep.subr.mxu0 0.0
  %99 = vmatpush2.msra.mxu0 0.0
  %100 = vmatprep.subr.mxu0 0.0
  %101 = vmatpush2.msra.mxu0 0.0
  %102 = vmatprep.mubr.f32.mxu0 0.0
  %103 = vmatmul.mubr.f32.gmra.mxu0 %v31
  %v104 = vpop.f32.mrf.mxu0
  %v105 = vadd.f32 0.0, %v104
  %v106 = vpop.f32.mrf.mxu0
  %v107 = vadd.f32 0.0, %v106
  %108 = vdwg.mxu0
  %v110 = vcombine.high %v24, %v24
  %v112 = vsel %vm29, %v23, 0
  %v114 = vsel %vm33, %v24, 0
  %v116 = vsel %vm33, %v110, 0
  %118 = vmatprep.subr.mxu0 0.0
  %119 = vmatpush1.msra.mxu0 0.0
  %120 = vmatprep.subr.mxu0 0.0
  %121 = vmatpush1.msra.mxu0 0.0
  %122 = vmatprep.subr.mxu0 0.0
  %123 = vmatpush1.msra.mxu0 0.0
  %124 = vmatprep.subr.mxu0 0.0
  %125 = vmatpush1.msra.mxu0 0.0
  %126 = vmatprep.subr.mxu0 0.0
  %127 = vmatpush1.msra.mxu0 0.0
  %128 = vmatprep.subr.mxu0 0.0
  %129 = vmatpush1.msra.mxu0 0.0
  %130 = vmatprep.subr.mxu0 0.0
  %131 = vmatpush1.msra.mxu0 0.0
  %132 = vmatprep.subr.mxu0 0.0
  %133 = vmatpush1.msra.mxu0 0.0
  %134 = vmatprep.subr.mxu0 0.0
  %135 = vmatpush1.msra.mxu0 0.0
  %136 = vmatprep.subr.mxu0 0.0
  %137 = vmatpush1.msra.mxu0 0.0
  %138 = vmatprep.subr.mxu0 0.0
  %139 = vmatpush1.msra.mxu0 0.0
  %140 = vmatprep.subr.mxu0 0.0
  %141 = vmatpush1.msra.mxu0 0.0
  %142 = vmatprep.subr.mxu0 0.0
  %143 = vmatpush1.msra.mxu0 0.0
  %144 = vmatprep.subr.mxu0 0.0
  %145 = vmatpush1.msra.mxu0 0.0
  %146 = vmatprep.subr.mxu0 0.0
  %147 = vmatpush1.msra.mxu0 0.0
  %148 = vmatprep.subr.mxu0 %v116
  %149 = vmatpush1.msra.mxu0 %v114
  %150 = vmatprep.subr.mxu0 0.0
  %151 = vmatpush2.msra.mxu0 0.0
  %152 = vmatprep.subr.mxu0 0.0
  %153 = vmatpush2.msra.mxu0 0.0
  %154 = vmatprep.subr.mxu0 0.0
  %155 = vmatpush2.msra.mxu0 0.0
  %156 = vmatprep.subr.mxu0 0.0
  %157 = vmatpush2.msra.mxu0 0.0
  %158 = vmatprep.subr.mxu0 0.0
  %159 = vmatpush2.msra.mxu0 0.0
  %160 = vmatprep.subr.mxu0 0.0
  %161 = vmatpush2.msra.mxu0 0.0
  %162 = vmatprep.subr.mxu0 0.0
  %163 = vmatpush2.msra.mxu0 0.0
  %164 = vmatprep.subr.mxu0 0.0
  %165 = vmatpush2.msra.mxu0 0.0
  %166 = vmatprep.subr.mxu0 0.0
  %167 = vmatpush2.msra.mxu0 0.0
  %168 = vmatprep.subr.mxu0 0.0
  %169 = vmatpush2.msra.mxu0 0.0
  %170 = vmatprep.subr.mxu0 0.0
  %171 = vmatpush2.msra.mxu0 0.0
  %172 = vmatprep.subr.mxu0 0.0
  %173 = vmatpush2.msra.mxu0 0.0
  %174 = vmatprep.subr.mxu0 0.0
  %175 = vmatpush2.msra.mxu0 0.0
  %176 = vmatprep.subr.mxu0 0.0
  %177 = vmatpush2.msra.mxu0 0.0
  %178 = vmatprep.subr.mxu0 0.0
  %179 = vmatpush2.msra.mxu0 0.0
  %180 = vmatprep.subr.mxu0 0.0
  %181 = vmatpush2.msra.mxu0 0.0
  %182 = vmatprep.mubr.f32.mxu0 0.0
  %183 = vmatmul.mubr.f32.gmra.mxu0 %v112
  %v184 = vpop.f32.mrf.mxu0
  %v185 = vadd.f32 %v105, %v184
  %v186 = vpop.f32.mrf.mxu0
  %v187 = vadd.f32 %v107, %v186
  %188 = vdwg.mxu0
  %v189 = vadd.f32 %v185, %v187
  %190 = vadd.xlane.f32.xlu0 %v189
  %v191 = vpop.xlane.xlu0 %190
  %v192 = vadd.f32 %v191, 0.0
  %v193 = vmul.f32 %v185, %v185
  %v194 = vmul.f32 %v187, %v187
  %v195 = vadd.f32 %v193, %v194
  %196 = vadd.xlane.f32.xlu0 %v195
  %v197 = vpop.xlane.xlu0 %196
  %v198 = vadd.f32 %v197, 0.0
  %s199 = scalar_lea.vmem %s0, 8
  %v200 = vld [vmem:[%s199] sm:$0xff]
  %s201 = scalar_lea.vmem %s1, 8
  %v202 = vld [vmem:[%s201] sm:$0xff]
  %v204 = vcombine.high %v202, %v202
  %v205 = vsel %vm33, %v202, 0
  %v207 = vsel %vm33, %v204, 0
  %209 = vmatprep.subr.mxu0 0.0
  %210 = vmatpush1.msra.mxu0 0.0
  %211 = vmatprep.subr.mxu0 0.0
  %212 = vmatpush1.msra.mxu0 0.0
  %213 = vmatprep.subr.mxu0 0.0
  %214 = vmatpush1.msra.mxu0 0.0
  %215 = vmatprep.subr.mxu0 0.0
  %216 = vmatpush1.msra.mxu0 0.0
  %217 = vmatprep.subr.mxu0 0.0
  %218 = vmatpush1.msra.mxu0 0.0
  %219 = vmatprep.subr.mxu0 0.0
  %220 = vmatpush1.msra.mxu0 0.0
  %221 = vmatprep.subr.mxu0 0.0
  %222 = vmatpush1.msra.mxu0 0.0
  %223 = vmatprep.subr.mxu0 0.0
  %224 = vmatpush1.msra.mxu0 0.0
  %225 = vmatprep.subr.mxu0 0.0
  %226 = vmatpush1.msra.mxu0 0.0
  %227 = vmatprep.subr.mxu0 0.0
  %228 = vmatpush1.msra.mxu0 0.0
  %229 = vmatprep.subr.mxu0 0.0
  %230 = vmatpush1.msra.mxu0 0.0
  %231 = vmatprep.subr.mxu0 0.0
  %232 = vmatpush1.msra.mxu0 0.0
  %233 = vmatprep.subr.mxu0 0.0
  %234 = vmatpush1.msra.mxu0 0.0
  %235 = vmatprep.subr.mxu0 0.0
  %236 = vmatpush1.msra.mxu0 0.0
  %237 = vmatprep.subr.mxu0 0.0
  %238 = vmatpush1.msra.mxu0 0.0
  %239 = vmatprep.subr.mxu0 %v207
  %240 = vmatpush1.msra.mxu0 %v205
  %241 = vmatprep.subr.mxu0 0.0
  %242 = vmatpush2.msra.mxu0 0.0
  %243 = vmatprep.subr.mxu0 0.0
  %244 = vmatpush2.msra.mxu0 0.0
  %245 = vmatprep.subr.mxu0 0.0
  %246 = vmatpush2.msra.mxu0 0.0
  %247 = vmatprep.subr.mxu0 0.0
  %248 = vmatpush2.msra.mxu0 0.0
  %249 = vmatprep.subr.mxu0 0.0
  %250 = vmatpush2.msra.mxu0 0.0
  %251 = vmatprep.subr.mxu0 0.0
  %252 = vmatpush2.msra.mxu0 0.0
  %253 = vmatprep.subr.mxu0 0.0
  %254 = vmatpush2.msra.mxu0 0.0
  %255 = vmatprep.subr.mxu0 0.0
  %256 = vmatpush2.msra.mxu0 0.0
  %257 = vmatprep.subr.mxu0 0.0
  %258 = vmatpush2.msra.mxu0 0.0
  %259 = vmatprep.subr.mxu0 0.0
  %260 = vmatpush2.msra.mxu0 0.0
  %261 = vmatprep.subr.mxu0 0.0
  %262 = vmatpush2.msra.mxu0 0.0
  %263 = vmatprep.subr.mxu0 0.0
  %264 = vmatpush2.msra.mxu0 0.0
  %265 = vmatprep.subr.mxu0 0.0
  %266 = vmatpush2.msra.mxu0 0.0
  %267 = vmatprep.subr.mxu0 0.0
  %268 = vmatpush2.msra.mxu0 0.0
  %269 = vmatprep.subr.mxu0 0.0
  %270 = vmatpush2.msra.mxu0 0.0
  %271 = vmatprep.subr.mxu0 0.0
  %272 = vmatpush2.msra.mxu0 0.0
  %273 = vmatprep.mubr.f32.mxu0 0.0
  %274 = vmatmul.mubr.f32.gmra.mxu0 %v31
  %v275 = vpop.f32.mrf.mxu0
  %v276 = vadd.f32 0.0, %v275
  %v277 = vpop.f32.mrf.mxu0
  %v278 = vadd.f32 0.0, %v277
  %279 = vdwg.mxu0
  %v281 = vcombine.high %v200, %v200
  %v282 = vsel %vm33, %v200, 0
  %v284 = vsel %vm33, %v281, 0
  %286 = vmatprep.subr.mxu0 0.0
  %287 = vmatpush1.msra.mxu0 0.0
  %288 = vmatprep.subr.mxu0 0.0
  %289 = vmatpush1.msra.mxu0 0.0
  %290 = vmatprep.subr.mxu0 0.0
  %291 = vmatpush1.msra.mxu0 0.0
  %292 = vmatprep.subr.mxu0 0.0
  %293 = vmatpush1.msra.mxu0 0.0
  %294 = vmatprep.subr.mxu0 0.0
  %295 = vmatpush1.msra.mxu0 0.0
  %296 = vmatprep.subr.mxu0 0.0
  %297 = vmatpush1.msra.mxu0 0.0
  %298 = vmatprep.subr.mxu0 0.0
  %299 = vmatpush1.msra.mxu0 0.0
  %300 = vmatprep.subr.mxu0 0.0
  %301 = vmatpush1.msra.mxu0 0.0
  %302 = vmatprep.subr.mxu0 0.0
  %303 = vmatpush1.msra.mxu0 0.0
  %304 = vmatprep.subr.mxu0 0.0
  %305 = vmatpush1.msra.mxu0 0.0
  %306 = vmatprep.subr.mxu0 0.0
  %307 = vmatpush1.msra.mxu0 0.0
  %308 = vmatprep.subr.mxu0 0.0
  %309 = vmatpush1.msra.mxu0 0.0
  %310 = vmatprep.subr.mxu0 0.0
  %311 = vmatpush1.msra.mxu0 0.0
  %312 = vmatprep.subr.mxu0 0.0
  %313 = vmatpush1.msra.mxu0 0.0
  %314 = vmatprep.subr.mxu0 0.0
  %315 = vmatpush1.msra.mxu0 0.0
  %316 = vmatprep.subr.mxu0 %v284
  %317 = vmatpush1.msra.mxu0 %v282
  %318 = vmatprep.subr.mxu0 0.0
  %319 = vmatpush2.msra.mxu0 0.0
  %320 = vmatprep.subr.mxu0 0.0
  %321 = vmatpush2.msra.mxu0 0.0
  %322 = vmatprep.subr.mxu0 0.0
  %323 = vmatpush2.msra.mxu0 0.0
  %324 = vmatprep.subr.mxu0 0.0
  %325 = vmatpush2.msra.mxu0 0.0
  %326 = vmatprep.subr.mxu0 0.0
  %327 = vmatpush2.msra.mxu0 0.0
  %328 = vmatprep.subr.mxu0 0.0
  %329 = vmatpush2.msra.mxu0 0.0
  %330 = vmatprep.subr.mxu0 0.0
  %331 = vmatpush2.msra.mxu0 0.0
  %332 = vmatprep.subr.mxu0 0.0
  %333 = vmatpush2.msra.mxu0 0.0
  %334 = vmatprep.subr.mxu0 0.0
  %335 = vmatpush2.msra.mxu0 0.0
  %336 = vmatprep.subr.mxu0 0.0
  %337 = vmatpush2.msra.mxu0 0.0
  %338 = vmatprep.subr.mxu0 0.0
  %339 = vmatpush2.msra.mxu0 0.0
  %340 = vmatprep.subr.mxu0 0.0
  %341 = vmatpush2.msra.mxu0 0.0
  %342 = vmatprep.subr.mxu0 0.0
  %343 = vmatpush2.msra.mxu0 0.0
  %344 = vmatprep.subr.mxu0 0.0
  %345 = vmatpush2.msra.mxu0 0.0
  %346 = vmatprep.subr.mxu0 0.0
  %347 = vmatpush2.msra.mxu0 0.0
  %348 = vmatprep.subr.mxu0 0.0
  %349 = vmatpush2.msra.mxu0 0.0
  %350 = vmatprep.mubr.f32.mxu0 0.0
  %351 = vmatmul.mubr.f32.gmra.mxu0 %v112
  %v352 = vpop.f32.mrf.mxu0
  %v353 = vadd.f32 %v276, %v352
  %v354 = vpop.f32.mrf.mxu0
  %v355 = vadd.f32 %v278, %v354
  %356 = vdwg.mxu0
  %v357 = vadd.f32 %v353, %v355
  %358 = vadd.xlane.f32.xlu0 %v357
  %v359 = vpop.xlane.xlu0 %358
  %v360 = vadd.f32 %v192, %v359
  %v361 = vmul.f32 %v353, %v353
  %v362 = vmul.f32 %v355, %v355
  %v363 = vadd.f32 %v361, %v362
  %364 = vadd.xlane.f32.xlu0 %v363
  %v365 = vpop.xlane.xlu0 %364
  %v366 = vadd.f32 %v198, %v365
  %v367 = vmul.f32 %v360, 0.001953125
  %v368 = vmul.f32 %v366, 0.001953125
  %v369 = vmul.f32 %v367, %v367
  %v370 = vsub.f32 %v368, %v369
  %v371 = vmax.f32 %v370, 0.0
  %v372 = vld [vmem:[%s4] sm:$0xff]
  %v373 = vadd.f32 %v371, 1e-05
  %v374 = vrsqrt.pop %v373
  %v375 = vmul.f32 %v372, %v374
  %v376 = vld [vmem:[%s5] sm:$0xff]
  %v377 = vmul.f32 %v367, %v375
  %v378 = vsub.f32 %v376, %v377
  %380 = vset.pattern.permute.xlu0 0
  %381 = vperm.xlu0 %380, %v375
  %v382 = vpop.permute.xlu0 %381
  %v384 = vmul.f32 %v185, %v382
  %v385 = vmul.f32 %v187, %v382
  %387 = vset.pattern.permute.xlu0 0
  %388 = vperm.xlu0 %387, %v378
  %v389 = vpop.permute.xlu0 %388
  %v391 = vadd.f32 %v384, %v389
  %v392 = vadd.f32 %v385, %v389
  %v393 = vmax.f32 %v391, 0.0
  %v394 = vmax.f32 %v392, 0.0
  %395 = vst [vmem:[%s6] sm:$0xff] %v393
  %396 = vst [vmem:[%s6 + $0x8] sm:$0xff] %v394
  %v397 = vmul.f32 %v353, %v382
  %v398 = vmul.f32 %v355, %v382
  %v399 = vadd.f32 %v397, %v389
  %v400 = vadd.f32 %v398, %v389
  %v401 = vmax.f32 %v399, 0.0
  %v402 = vmax.f32 %v400, 0.0
  %s403 = scalar_lea.vmem %s6, 16
  %404 = vst [vmem:[%s403] sm:$0xff] %v401
  %405 = vst [vmem:[%s403 + $0x8] sm:$0xff] %v402
  // Predicated region
  $region26: #{temporal_conv3d.1} parent=0 // pred_check
    _
  $region27: #{temporal_conv3d.1} parent=0 // pred_check_branch
    %407 = sbr.rel (0) target = $region29
  $region28: #{temporal_conv3d.1} parent=0 // pred_region
    _
  $region29: #{temporal_conv3d.1} parent=0 // pred_fallthru
    _
  // Predicated region
  $region30: #{temporal_conv3d.1} parent=0 // pred_check
    _
  $region31: #{temporal_conv3d.1} parent=0 // pred_check_branch
    %409 = sbr.rel (0) target = $region33
  $region32: #{temporal_conv3d.1} parent=0 // pred_region
    _
  $region33: #{temporal_conv3d.1} parent=0 // pred_fallthru
    _

</llo_original>
